<compile_context>
chip_gen: v5e
topology: v5e:2x2
jax: 0.10.0
libtpu: 0.0.40
codegen_flags: <defaults>
</compile_context>

<pallas_src>
import functools

import jax
import jax.numpy as jnp
from jax.experimental import pallas as pl
from jax.experimental.pallas import tpu as pltpu


def _round_up(x, m):
    return ((x + m - 1) // m) * m


# ----------------------------------------------------------------------------
# Stage 1: tiny MLP prologue kernel (single step, everything resident in VMEM).
# ----------------------------------------------------------------------------
def _mlp_kernel(x_ref, w1_ref, b1_ref, w2_ref, b2_ref, w3_ref, b3_ref,
                init_ref, out_ref):
    x = x_ref[...]                                                       # (8, 64)
    h1 = jnp.dot(x, w1_ref[...], preferred_element_type=jnp.float32) + b1_ref[...]
    h1 = jnp.maximum(h1, 0.1 * h1)                                       # LeakyReLU(0.1)
    h2 = jnp.dot(h1, w2_ref[...], preferred_element_type=jnp.float32) + b2_ref[...]
    h2 = jnp.maximum(h2, 0.1 * h2)
    h3 = jnp.dot(h2, w3_ref[...], preferred_element_type=jnp.float32) + b3_ref[...]
    out_ref[...] = jnp.tanh(0.5 * h3) + init_ref[...]                    # (8, 128)


def _mlp_params(x_pad, w1, b1, w2, b2, w3p, b3p, init_vec):
    return pl.pallas_call(
        _mlp_kernel,
        out_shape=jax.ShapeDtypeStruct((8, 128), jnp.float32),
    )(x_pad, w1, b1, w2, b2, w3p, b3p, init_vec)


# ----------------------------------------------------------------------------
# Stage 3: rasterization kernel. Reads 6 precomputed scalars from SMEM.
# ----------------------------------------------------------------------------
def _make_raster_kernel(mu, sigma, eta, tile_h, tile_w):
    mu_f = float(mu)
    eta_f = float(eta)
    inv_two_sigma2 = 1.0 / (2.0 * float(sigma) * float(sigma))

    def kernel(coef_ref, curve_ref, region_ref):
        # Hoisted per-ellipse scalars (SMEM -> sreg broadcast; no per-tile MLP,
        # no trig, no masked reductions).
        a1 = coef_ref[0]
        b1 = coef_ref[1]
        c1 = coef_ref[2]
        a2 = coef_ref[3]
        b2 = coef_ref[4]
        c2 = coef_ref[5]

        row0 = pl.program_id(0) * tile_h
        col0 = pl.program_id(1) * tile_w
        rows = (jax.lax.broadcasted_iota(jnp.int32, (tile_h, tile_w), 0)
                + row0).astype(jnp.float32)                 # y coordinate
        cols = (jax.lax.broadcasted_iota(jnp.int32, (tile_h, tile_w), 1)
                + col0).astype(jnp.float32)                 # x coordinate

        # u = ((x-cx)cos + (y-cy)sin)/a, v = (-(x-cx)sin + (y-cy)cos)/b, folded.
        u = cols * a1 + rows * b1 + c1
        v = cols * a2 + rows * b2 + c2
        d = u * u + v * v
        dm = d - mu_f
        curve = jnp.exp(-(dm * dm) * inv_two_sigma2)

        # sigmoid(eta*(mu-d)) = e / (1+e); reciprocal goes to the EUP slot.
        z = jnp.minimum(eta_f * (mu_f - d), 80.0)           # overflow guard
        e = jnp.exp(z)
        region = e * pl.reciprocal(1.0 + e, approx=True)

        curve_ref[...] = curve.astype(curve_ref.dtype)
        region_ref[...] = region.astype(region_ref.dtype)

    return kernel


def _pick_tiles(h, w, out_bytes):
    """Lane-dense padding + (row, col) tiles, ~4 MiB per output tile (v7x-safe)."""
    w_pad = max(128, _round_up(w, 128))
    tile_w = min(w_pad, 4096)                 # column-tile only for very wide images
    w_pad = _round_up(w_pad, tile_w)

    budget_elems = (4 * 1024 * 1024) // out_bytes
    tile_h = max(8, min(_round_up(h, 8), max(8, (budget_elems // tile_w) // 8 * 8)))
    h_pad = _round_up(_round_up(h, 8), tile_h)

    # Ensure >= 2 tiles when possible so both v7x TensorCores get raster work.
    if (h_pad // tile_h) * (w_pad // tile_w) < 2 and h_pad >= 16:
        tile_h = max(8, ((h_pad // 2) // 8) * 8)
        h_pad = _round_up(h_pad, tile_h)
    return h_pad, w_pad, tile_h, tile_w


def _raster_call(coef, h, w, mu, sigma, eta, out_dtype):
    out_bytes = jnp.dtype(out_dtype).itemsize
    h_pad, w_pad, tile_h, tile_w = _pick_tiles(h, w, out_bytes)
    grid = (h_pad // tile_h, w_pad // tile_w)
    kernel = _make_raster_kernel(mu, sigma, eta, tile_h, tile_w)

    out_spec = pl.BlockSpec((tile_h, tile_w), lambda i, j: (i, j))
    tile_bytes = tile_h * tile_w * out_bytes
    # 2 outputs x 2 pipeline buffers x tile + slack; stays under v7x's 64 MiB.
    vmem_limit = min(64 * 1024 * 1024,
                     max(32 * 1024 * 1024, 4 * tile_bytes + 4 * 1024 * 1024))

    cost = pl.CostEstimate(
        flops=int(16 * h_pad * w_pad),
        transcendentals=int(3 * h_pad * w_pad),
        bytes_accessed=int(2 * h_pad * w_pad * out_bytes + coef.size * 4),
    )

    curve, region = pl.pallas_call(
        kernel,
        out_shape=(jax.ShapeDtypeStruct((h_pad, w_pad), out_dtype),
                   jax.ShapeDtypeStruct((h_pad, w_pad), out_dtype)),
        grid=grid,
        in_specs=[pl.BlockSpec(memory_space=pltpu.MemorySpace.SMEM)],  # 6 scalars
        out_specs=(out_spec, out_spec),
        compiler_params=pltpu.CompilerParams(
            dimension_semantics=("parallel", "parallel"),
            vmem_limit_bytes=int(vmem_limit)),
        cost_estimate=cost,
    )(coef)
    return curve, region, h_pad, w_pad


# ----------------------------------------------------------------------------
# EllipseGenerator forward (thin JAX wrapper: padding, scalar folding, crop).
# ----------------------------------------------------------------------------
@functools.partial(jax.jit,
                   static_argnames=("h", "w", "mu", "sigma", "eta", "out_dtype"))
def ellipse_generator_forward(x, params, init_ellipse, h, w,
                              mu=1.0, sigma=0.1, eta=10.0,
                              out_dtype=jnp.float32):
    w1, b1, w2, b2, w3, b3 = params

    # Only out[0] is consumed downstream -> feed row 0 only, padded to (8, 64).
    x_pad = jnp.zeros((8, 64), jnp.float32).at[0:1, :].set(
        x[0:1, :].astype(jnp.float32))
    # Lane-pad fc3 / bias / init so every MLP tensor is 128-lane dense.
    w3p = jnp.zeros((128, 128), jnp.float32).at[:, :5].set(w3.astype(jnp.float32))
    b3p = jnp.zeros((1, 128), jnp.float32).at[:, :5].set(
        b3.reshape(1, 5).astype(jnp.float32))
    init_vec = jnp.zeros((1, 128), jnp.float32).at[0, :5].set(
        init_ellipse.astype(jnp.float32))

    # --- Stage 1: MLP prologue kernel (runs once, not per raster tile) ---
    p_all = _mlp_params(
        x_pad,
        w1.astype(jnp.float32), b1.reshape(1, 128).astype(jnp.float32),
        w2.astype(jnp.float32), b2.reshape(1, 128).astype(jnp.float32),
        w3p, b3p, init_vec)
    p = p_all[0, :5]
    cx, cy, a, b, theta = p[0], p[1], p[2], p[3], p[4]

    # --- Stage 2: fold per-ellipse scalar math once (cos/sin, divisions) ---
    ct = jnp.cos(theta)
    st = jnp.sin(theta)
    a1 = ct / a
    b1c = st / a
    c1 = -(cx * ct + cy * st) / a
    a2 = -st / b
    b2c = ct / b
    c2 = (cx * st - cy * ct) / b
    zero = jnp.zeros_like(a1)
    coef = jnp.stack([a1, b1c, c1, a2, b2c, c2, zero, zero]).astype(jnp.float32)

    # --- Stage 3: tiled raster kernel ---
    curve_pad, region_pad, h_pad, w_pad = _raster_call(
        coef, h, w, float(mu), float(sigma), float(eta), out_dtype)

    if (h_pad, w_pad) == (h, w):          # aligned fast path: no crop copy
        curve, region = curve_pad, region_pad
    else:
        curve = curve_pad[:h, :w]
        region = region_pad[:h, :w]
    return curve, region, (cx, cy, a, b, theta)


# ----------------------------------------------------------------------------
# Deterministic parameter construction (shapes from the nn.Module __init__,
# weights stored (in_features, out_features), biases (out_features,)).
# ----------------------------------------------------------------------------
def make_params(key):
    k1, k2, k3, k4, k5, k6 = jax.random.split(key, 6)
    w1 = 0.1 * jax.random.normal(k1, (64, 128), jnp.float32)
    b1 = 0.1 * jax.random.normal(k2, (128,), jnp.float32)
    w2 = 0.1 * jax.random.normal(k3, (128, 128), jnp.float32)
    b2 = 0.1 * jax.random.normal(k4, (128,), jnp.float32)
    w3 = 0.1 * jax.random.normal(k5, (128, 5), jnp.float32)
    b3 = 0.1 * jax.random.normal(k6, (5,), jnp.float32)
    return w1, b1, w2, b2, w3, b3


# Pure-JAX references (for the sanity check).
def _reference_raster(cx, cy, a, b, theta, h, w, mu, sigma, eta):
    ys = jnp.arange(h, dtype=jnp.float32)[:, None]
    xs = jnp.arange(w, dtype=jnp.float32)[None, :]
    dx, dy = xs - cx, ys - cy
    u = (dx * jnp.cos(theta) + dy * jnp.sin(theta)) / a
    v = (-dx * jnp.sin(theta) + dy * jnp.cos(theta)) / b
    d = u * u + v * v
    curve = jnp.exp(-((d - mu) ** 2) / (2.0 * sigma * sigma))
    region = jax.nn.sigmoid(eta * (mu - d))
    return curve, region


def _reference_forward(x, params, init_ellipse, h, w, mu, sigma, eta):
    w1, b1, w2, b2, w3, b3 = params
    leaky = lambda v: jnp.where(v >= 0, v, 0.1 * v)
    hh = leaky(x @ w1 + b1)
    hh = leaky(hh @ w2 + b2)
    out = jnp.tanh(0.5 * (hh @ w3 + b3))
    p0 = out[0]
    cx = init_ellipse[0] + p0[0]
    cy = init_ellipse[1] + p0[1]
    a = init_ellipse[2] + p0[2]
    b = init_ellipse[3] + p0[3]
    theta = init_ellipse[4] + p0[4]
    curve, region = _reference_raster(cx, cy, a, b, theta, h, w, mu, sigma, eta)
    return curve, region, (cx, cy, a, b, theta)


if __name__ == "__main__":
    key = jax.random.PRNGKey(0)
    k_in, k_par = jax.random.split(key)

    H, W = 16, 16
    N = 2
    x = jax.random.normal(k_in, (N, 64), jnp.float32)
    params = make_params(k_par)
    init_ellipse = jnp.array([8.0, 8.0, 5.0, 3.0, 0.3], jnp.float32)

    curve, region, (cx, cy, a, b, theta) = ellipse_generator_forward(
        x, params, init_ellipse, H, W, mu=1.0, sigma=0.1, eta=10.0)
    jax.block_until_ready((curve, region, cx, cy, a, b, theta))

    assert curve.shape == (H, W) and region.shape == (H, W)
    assert curve.dtype == jnp.float32 and region.dtype == jnp.float32

    # 1) Adjusted ellipse params vs pure-JAX MLP reference (loose: MXU precision).
    _, _, (rcx, rcy, ra, rb, rth) = _reference_forward(
        x, params, init_ellipse, H, W, 1.0, 0.1, 10.0)
    kparams = jnp.stack([cx, cy, a, b, theta])
    rparams = jnp.stack([rcx, rcy, ra, rb, rth])
    assert float(jnp.max(jnp.abs(kparams - rparams))) < 2e-2

    # 2) Raster maps vs reference raster evaluated at the kernel's own params
    #    (isolates the rasterization math from MLP precision differences).
    kc, kr = _reference_raster(cx, cy, a, b, theta, H, W, 1.0, 0.1, 10.0)
    assert float(jnp.max(jnp.abs(curve - kc))) < 1e-2
    assert float(jnp.max(jnp.abs(region - kr))) < 1e-2

    print("KERNEL_OK")
</pallas_src>

<mosaic_0001>
module attributes {stable_mosaic.version = 11 : i64} {
  func.func @_mlp_kernel(%arg0: memref<8x64xf32, #tpu.memory_space<vmem>>, %arg1: memref<64x128xf32, #tpu.memory_space<vmem>>, %arg2: memref<1x128xf32, #tpu.memory_space<vmem>>, %arg3: memref<128x128xf32, #tpu.memory_space<vmem>>, %arg4: memref<1x128xf32, #tpu.memory_space<vmem>>, %arg5: memref<128x128xf32, #tpu.memory_space<vmem>>, %arg6: memref<1x128xf32, #tpu.memory_space<vmem>>, %arg7: memref<1x128xf32, #tpu.memory_space<vmem>>, %arg8: memref<8x128xf32, #tpu.memory_space<vmem>>) attributes {dimension_semantics = [], scalar_prefetch = 0 : i64, scratch_operands = 0 : i64, tpu.core_type = #tpu.core_type<tc>} {
    %c0 = arith.constant 0 : index
    %c0_0 = arith.constant 0 : index
    %0 = vector.load %arg0[%c0, %c0_0] : memref<8x64xf32, #tpu.memory_space<vmem>>, vector<8x64xf32>
    %c0_1 = arith.constant 0 : index
    %c0_2 = arith.constant 0 : index
    %1 = vector.load %arg1[%c0_1, %c0_2] : memref<64x128xf32, #tpu.memory_space<vmem>>, vector<64x128xf32>
    %cst = arith.constant dense<0.000000e+00> : vector<8x128xf32>
    %2 = tpu.matmul %0, %1, %cst {dimension_numbers = #tpu.dot_dimension_numbers<[1], [0], [0], [1], [0, 0, 1, 1], [], []>} : vector<8x64xf32>, vector<64x128xf32>, vector<8x128xf32> -> vector<8x128xf32>
    %c0_3 = arith.constant 0 : index
    %c0_4 = arith.constant 0 : index
    %3 = vector.load %arg2[%c0_3, %c0_4] : memref<1x128xf32, #tpu.memory_space<vmem>>, vector<1x128xf32>
    %4 = vector.broadcast %3 : vector<1x128xf32> to vector<8x128xf32>
    %5 = arith.addf %2, %4 : vector<8x128xf32>
    %cst_5 = arith.constant 1.000000e-01 : f32
    %6 = vector.broadcast %cst_5 : f32 to vector<8x128xf32>
    %7 = arith.mulf %6, %5 : vector<8x128xf32>
    %8 = arith.maximumf %5, %7 : vector<8x128xf32>
    %c0_6 = arith.constant 0 : index
    %c0_7 = arith.constant 0 : index
    %9 = vector.load %arg3[%c0_6, %c0_7] : memref<128x128xf32, #tpu.memory_space<vmem>>, vector<128x128xf32>
    %cst_8 = arith.constant dense<0.000000e+00> : vector<8x128xf32>
    %10 = tpu.matmul %8, %9, %cst_8 {dimension_numbers = #tpu.dot_dimension_numbers<[1], [0], [0], [1], [0, 0, 1, 1], [], []>} : vector<8x128xf32>, vector<128x128xf32>, vector<8x128xf32> -> vector<8x128xf32>
    %c0_9 = arith.constant 0 : index
    %c0_10 = arith.constant 0 : index
    %11 = vector.load %arg4[%c0_9, %c0_10] : memref<1x128xf32, #tpu.memory_space<vmem>>, vector<1x128xf32>
    %12 = vector.broadcast %11 : vector<1x128xf32> to vector<8x128xf32>
    %13 = arith.addf %10, %12 : vector<8x128xf32>
    %cst_11 = arith.constant 1.000000e-01 : f32
    %14 = vector.broadcast %cst_11 : f32 to vector<8x128xf32>
    %15 = arith.mulf %14, %13 : vector<8x128xf32>
    %16 = arith.maximumf %13, %15 : vector<8x128xf32>
    %c0_12 = arith.constant 0 : index
    %c0_13 = arith.constant 0 : index
    %17 = vector.load %arg5[%c0_12, %c0_13] : memref<128x128xf32, #tpu.memory_space<vmem>>, vector<128x128xf32>
    %cst_14 = arith.constant dense<0.000000e+00> : vector<8x128xf32>
    %18 = tpu.matmul %16, %17, %cst_14 {dimension_numbers = #tpu.dot_dimension_numbers<[1], [0], [0], [1], [0, 0, 1, 1], [], []>} : vector<8x128xf32>, vector<128x128xf32>, vector<8x128xf32> -> vector<8x128xf32>
    %c0_15 = arith.constant 0 : index
    %c0_16 = arith.constant 0 : index
    %19 = vector.load %arg6[%c0_15, %c0_16] : memref<1x128xf32, #tpu.memory_space<vmem>>, vector<1x128xf32>
    %20 = vector.broadcast %19 : vector<1x128xf32> to vector<8x128xf32>
    %21 = arith.addf %18, %20 : vector<8x128xf32>
    %cst_17 = arith.constant 5.000000e-01 : f32
    %22 = vector.broadcast %cst_17 : f32 to vector<8x128xf32>
    %23 = arith.mulf %22, %21 : vector<8x128xf32>
    %24 = math.tanh %23 : vector<8x128xf32>
    %c0_18 = arith.constant 0 : index
    %c0_19 = arith.constant 0 : index
    %25 = vector.load %arg7[%c0_18, %c0_19] : memref<1x128xf32, #tpu.memory_space<vmem>>, vector<1x128xf32>
    %26 = vector.broadcast %25 : vector<1x128xf32> to vector<8x128xf32>
    %27 = arith.addf %24, %26 : vector<8x128xf32>
    %c0_20 = arith.constant 0 : index
    %c0_21 = arith.constant 0 : index
    %28 = vector.load %arg8[%c0_20, %c0_21] : memref<8x128xf32, #tpu.memory_space<vmem>>, vector<8x128xf32>
    tpu.vector_store %arg8[%c0_20, %c0_21], %27 {strides = array<i32>} : memref<8x128xf32, #tpu.memory_space<vmem>>, vector<8x128xf32>,
    return
  }
}

module attributes {stable_mosaic.version = 11 : i64} {
  func.func @kernel(%arg0: i32, %arg1: i32, %arg2: memref<8xf32, #tpu.memory_space<smem>>, %arg3: memref<8x128xf32, #tpu.memory_space<vmem>>, %arg4: memref<8x128xf32, #tpu.memory_space<vmem>>) attributes {dimension_semantics = [#tpu.dimension_semantics<parallel>, #tpu.dimension_semantics<parallel>], iteration_bounds = array<i64: 2, 1>, scalar_prefetch = 0 : i64, scratch_operands = 0 : i64, tpu.core_type = #tpu.core_type<tc>, window_params = [{transform_indices = @transform_0, window_bounds = array<i64: 8>}, {transform_indices = @transform_1, window_bounds = array<i64: 8, 128>}, {transform_indices = @transform_2, window_bounds = array<i64: 8, 128>}]} {
    %c0 = arith.constant 0 : index
    %0 = memref.load %arg2[%c0] : memref<8xf32, #tpu.memory_space<smem>>
    %c1 = arith.constant 1 : index
    %1 = memref.load %arg2[%c1] : memref<8xf32, #tpu.memory_space<smem>>
    %c2 = arith.constant 2 : index
    %2 = memref.load %arg2[%c2] : memref<8xf32, #tpu.memory_space<smem>>
    %c3 = arith.constant 3 : index
    %3 = memref.load %arg2[%c3] : memref<8xf32, #tpu.memory_space<smem>>
    %c4 = arith.constant 4 : index
    %4 = memref.load %arg2[%c4] : memref<8xf32, #tpu.memory_space<smem>>
    %c5 = arith.constant 5 : index
    %5 = memref.load %arg2[%c5] : memref<8xf32, #tpu.memory_space<smem>>
    %c8_i32 = arith.constant 8 : i32
    %6 = arith.muli %arg0, %c8_i32 : i32
    %c128_i32 = arith.constant 128 : i32
    %7 = arith.muli %arg1, %c128_i32 : i32
    %8 = tpu.iota {dimensions = array<i32: 0>} : vector<8x128xi32>
    %9 = vector.broadcast %6 : i32 to vector<8x128xi32>
    %10 = arith.addi %8, %9 : vector<8x128xi32>
    %11 = arith.sitofp %10 : vector<8x128xi32> to vector<8x128xf32>
    %12 = tpu.iota {dimensions = array<i32: 1>} : vector<8x128xi32>
    %13 = vector.broadcast %7 : i32 to vector<8x128xi32>
    %14 = arith.addi %12, %13 : vector<8x128xi32>
    %15 = arith.sitofp %14 : vector<8x128xi32> to vector<8x128xf32>
    %16 = vector.broadcast %0 : f32 to vector<8x128xf32>
    %17 = arith.mulf %15, %16 : vector<8x128xf32>
    %18 = vector.broadcast %1 : f32 to vector<8x128xf32>
    %19 = arith.mulf %11, %18 : vector<8x128xf32>
    %20 = arith.addf %17, %19 : vector<8x128xf32>
    %21 = vector.broadcast %2 : f32 to vector<8x128xf32>
    %22 = arith.addf %20, %21 : vector<8x128xf32>
    %23 = vector.broadcast %3 : f32 to vector<8x128xf32>
    %24 = arith.mulf %15, %23 : vector<8x128xf32>
    %25 = vector.broadcast %4 : f32 to vector<8x128xf32>
    %26 = arith.mulf %11, %25 : vector<8x128xf32>
    %27 = arith.addf %24, %26 : vector<8x128xf32>
    %28 = vector.broadcast %5 : f32 to vector<8x128xf32>
    %29 = arith.addf %27, %28 : vector<8x128xf32>
    %30 = arith.mulf %22, %22 : vector<8x128xf32>
    %31 = arith.mulf %29, %29 : vector<8x128xf32>
    %32 = arith.addf %30, %31 : vector<8x128xf32>
    %cst = arith.constant 1.000000e+00 : f32
    %33 = vector.broadcast %cst : f32 to vector<8x128xf32>
    %34 = arith.subf %32, %33 : vector<8x128xf32>
    %35 = arith.mulf %34, %34 : vector<8x128xf32>
    %cst_0 = arith.constant 0.000000e+00 : f32
    %36 = vector.broadcast %cst_0 : f32 to vector<8x128xf32>
    %37 = arith.subf %36, %35 : vector<8x128xf32>
    %cst_1 = arith.constant 5.000000e+01 : f32
    %38 = vector.broadcast %cst_1 : f32 to vector<8x128xf32>
    %39 = arith.mulf %37, %38 : vector<8x128xf32>
    %40 = math.exp %39 : vector<8x128xf32>
    %cst_2 = arith.constant 1.000000e+00 : f32
    %41 = vector.broadcast %cst_2 : f32 to vector<8x128xf32>
    %42 = arith.subf %41, %32 : vector<8x128xf32>
    %cst_3 = arith.constant 1.000000e+01 : f32
    %43 = vector.broadcast %cst_3 : f32 to vector<8x128xf32>
    %44 = arith.mulf %43, %42 : vector<8x128xf32>
    %cst_4 = arith.constant 8.000000e+01 : f32
    %45 = vector.broadcast %cst_4 : f32 to vector<8x128xf32>
    %46 = arith.minimumf %44, %45 : vector<8x128xf32>
    %47 = math.exp %46 : vector<8x128xf32>
    %cst_5 = arith.constant 1.000000e+00 : f32
    %48 = vector.broadcast %cst_5 : f32 to vector<8x128xf32>
    %49 = arith.addf %48, %47 : vector<8x128xf32>
    %50 = tpu.reciprocal %49 {approx = true} : vector<8x128xf32> -> vector<8x128xf32>
    %51 = arith.mulf %47, %50 : vector<8x128xf32>
    %c0_6 = arith.constant 0 : index
    %c0_7 = arith.constant 0 : index
    %52 = vector.load %arg3[%c0_6, %c0_7] : memref<8x128xf32, #tpu.memory_space<vmem>>, vector<8x128xf32>
    tpu.vector_store %arg3[%c0_6, %c0_7], %40 {strides = array<i32>} : memref<8x128xf32, #tpu.memory_space<vmem>>, vector<8x128xf32>,
    %c0_8 = arith.constant 0 : index
    %c0_9 = arith.constant 0 : index
    %53 = vector.load %arg4[%c0_8, %c0_9] : memref<8x128xf32, #tpu.memory_space<vmem>>, vector<8x128xf32>
    tpu.vector_store %arg4[%c0_8, %c0_9], %51 {strides = array<i32>} : memref<8x128xf32, #tpu.memory_space<vmem>>, vector<8x128xf32>,
    return
  }
  func.func @transform_0(%arg0: i32, %arg1: i32) -> i32 {
    %c0_i32 = arith.constant 0 : i32
    %c0_i32_0 = arith.constant 0 : i32
    return %c0_i32 : i32
  }
  func.func @transform_1(%arg0: i32, %arg1: i32) -> (i32, i32) {
    %c0_i32 = arith.constant 0 : i32
    return %arg0, %arg1 : i32, i32
  }
  func.func @transform_2(%arg0: i32, %arg1: i32) -> (i32, i32) {
    %c0_i32 = arith.constant 0 : i32
    return %arg0, %arg1 : i32, i32
  }
}

</mosaic_0001>

<llo_original>
// kernel: ellipse_generator_forward.3
$region0: #{ellipse_generator_forward.3}
  #allocation0 [shape = 'u32[]', space=smem, size = 0x4, offset = 0x4, fixed_abs, tag = 'smem constant byte address 0x4 - core index']
  #allocation1 [shape = 'u32[72,128]{1,0:T(1,128)}', space=vmem, size = 0x9000, scoped, tag = 'internal scratch']
  %s0 = inlined_call_operand.vmem [shape: f32[8], index: 0, kind: input, shape index: {}]
  %s1 = inlined_call_operand.hbm [shape: f32[16,128], index: 1, kind: output, shape index: {0}]
  %s2 = inlined_call_operand.hbm [shape: f32[16,128], index: 2, kind: output, shape index: {1}]
  %3 = xla_tuple %s1, %s2
  %s4 = sld [smem:[#allocation0]]
  $region49: #{ellipse_generator_forward.3} parent=0
    _
  %s6 = ssub.s32 1, %s4
  %s7 = scalar_select 0, %s6, %s4
  $region1: #{ellipse_generator_forward.3} parent=0
    #allocation2 [shape = 'u8[512]{0}', space=smem, size = 0x200, scoped, tag = 'input window, operand 0, single buffered']
    #allocation3 [shape = 's32[2]{0}', space=sflag, size = 0x8, scoped, tag = 'scoped memory for ellipse_generator_forward.3']
    #allocation4 [shape = 's32[2]{0}', space=sflag, size = 0x8, scoped, tag = 'scoped memory for ellipse_generator_forward.3']
    #allocation5 [shape = 'u8[8192]{0}', space=vmem, size = 0x2000, scoped, tag = 'output window, operand 0']
    #allocation6 [shape = 'u8[8192]{0}', space=vmem, size = 0x2000, scoped, tag = 'output window, operand 1']
    #allocation7 [shape = 's32[2]{0}', space=sflag, size = 0x8, scoped, tag = 'scoped memory for ellipse_generator_forward.3']
    %8 = vsyncpa [#allocation4], 0
    %9 = vsyncpa [#allocation3], 0
    %s10 = scalar_lea.sflag [#allocation3], 1
    %11 = vsyncpa %s10, 0
    %12 = vsyncpa [#allocation7], 0
    %s13 = scalar_lea.sflag [#allocation7], 1
    %14 = vsyncpa %s13, 0
    loop: start=0, step=1, limit=4
    $region2: #{ellipse_generator_forward.3} parent=1 // loop_pre_header
      _
    $region3: #{ellipse_generator_forward.3} parent=1 // loop_header
      %s16 = sphi 0, %s20
      %p17 = scmp.ge.s32.totalorder %s16, 4
      %s23 = sphi 0, %s35
      %s24 = sphi 0, %s31
      %s25 = sphi 0, %s23
      %s26 = sphi 0, %s24
      %s27 = sphi 0, %s25
      %s28 = sphi 0, %s26
      %s36 = sphi 0, %s36
      %s38 = sphi 0, %s36
      %s39 = sphi 0, %s38
      %s53 = sphi 0, %s39
      %s61 = sphi 0, %s63
      %s64 = sphi 0, %s61
      %s65 = sphi 0, %s64
      %s81 = sphi 0, %s65
      %s89 = sphi 0, %s91
      %s92 = sphi 0, %s89
      %s93 = sphi 0, %s92
      %s109 = sphi 0, %s93
    $region4: #{ellipse_generator_forward.3} parent=1 // loop_header_branch
      %19 = sbr.rel (%p17) target = $region8
    $region5: #{ellipse_generator_forward.3} parent=1 // loop_body
      %s21 = ssub.s32 %s16, 1
      %s22 = ssub.s32 %s16, 2
      %s29 = sadd.s32 1, %s24
      %p30 = scmp.ge.s32.totalorder %s29, 1
      %s31 = scalar_select %p30, 0, %s29
      %s32 = sadd.s32 1, %s23
      %s33 = scalar_select %p30, %s32, %s23
      %p34 = scmp.ge.s32.totalorder %s33, 2
      %s35 = scalar_select %p34, 0, %s33
      %s37 = sadd.s32 %s36, 1
      %p40 = scmp.eq.s32.totalorder %s16, 1
      %p41 = scmp.ne.s32.totalorder %s36, %s38
      %p42 = scmp.eq.s32.totalorder %s16, 0
      %p43 = por %p41, %p42
      %p44 = scmp.ne.s32.totalorder %s36, %s38
      %p45 = scmp.eq.s32.totalorder %s21, 1
      %p46 = por %p44, %p45
      %p47 = scmp.ne.s32.totalorder %s38, %s39
      %p48 = scmp.eq.s32.totalorder %s21, 0
      %p49 = por %p47, %p48
      %p50 = scmp.ne.s32.totalorder %s38, %s39
      %p51 = scmp.eq.s32.totalorder %s22, 1
      %p52 = por %p50, %p51
      %p54 = scmp.ne.s32.totalorder %s39, %s53
      %p55 = scmp.eq.s32.totalorder %s22, 0
      %p56 = por %p54, %p55
      %s57 = ssub.s32 %s23, %s35
      %s58 = ssub.s32 %s24, %s31
      %s59 = sor.u32 %s57, %s58
      %p60 = scmp.eq.s32.totalorder %s59, 0
      %s62 = sadd.s32 %s61, 1
      %s63 = scalar_select %p60, %s61, %s62
      %p66 = pneg %p60
      %p67 = scmp.eq.s32.totalorder %s16, 1
      %p68 = por %p66, %p67
      %p69 = scmp.ne.s32.totalorder %s61, %s64
      %p70 = scmp.eq.s32.totalorder %s16, 0
      %p71 = por %p69, %p70
      %p72 = scmp.ne.s32.totalorder %s61, %s64
      %p73 = scmp.eq.s32.totalorder %s21, 1
      %p74 = por %p72, %p73
      %p75 = scmp.ne.s32.totalorder %s64, %s65
      %p76 = scmp.eq.s32.totalorder %s21, 0
      %p77 = por %p75, %p76
      %p78 = scmp.ne.s32.totalorder %s64, %s65
      %p79 = scmp.eq.s32.totalorder %s22, 1
      %p80 = por %p78, %p79
      %p82 = scmp.ne.s32.totalorder %s65, %s81
      %p83 = scmp.eq.s32.totalorder %s22, 0
      %p84 = por %p82, %p83
      %s85 = ssub.s32 %s23, %s35
      %s86 = ssub.s32 %s24, %s31
      %s87 = sor.u32 %s85, %s86
      %p88 = scmp.eq.s32.totalorder %s87, 0
      %s90 = sadd.s32 %s89, 1
      %s91 = scalar_select %p88, %s89, %s90
      %p94 = pneg %p88
      %p95 = scmp.eq.s32.totalorder %s16, 1
      %p96 = por %p94, %p95
      %p97 = scmp.ne.s32.totalorder %s89, %s92
      %p98 = scmp.eq.s32.totalorder %s16, 0
      %p99 = por %p97, %p98
      %p100 = scmp.ne.s32.totalorder %s89, %s92
      %p101 = scmp.eq.s32.totalorder %s21, 1
      %p102 = por %p100, %p101
      %p103 = scmp.ne.s32.totalorder %s92, %s93
      %p104 = scmp.eq.s32.totalorder %s21, 0
      %p105 = por %p103, %p104
      %p106 = scmp.ne.s32.totalorder %s92, %s93
      %p107 = scmp.eq.s32.totalorder %s22, 1
      %p108 = por %p106, %p107
      %p110 = scmp.ne.s32.totalorder %s93, %s109
      %p111 = scmp.eq.s32.totalorder %s22, 0
      %p112 = por %p110, %p111
      %p113 = scmp.le.s32.totalorder 1, %s16
      %p114 = scmp.lt.s32.totalorder %s16, 3
      %p115 = pnand %p113, %p114
      %p116 = pneg %p115
      // Predicated region
      $region9: #{ellipse_generator_forward.3} parent=5 // pred_check
        _
      $region10: #{ellipse_generator_forward.3} parent=5 // pred_check_branch
        %118 = sbr.rel (%p115) target = $region12
      $region11: #{ellipse_generator_forward.3} parent=5 // pred_region
        %s119 = ssub.s32 %s16, 1
        // Predicated region
        $region13: #{ellipse_generator_forward.3} parent=11 // pred_check
          %p120 = pneg %p49
        $region14: #{ellipse_generator_forward.3} parent=11 // pred_check_branch
          %122 = sbr.rel (%p120) target = $region16
        $region15: #{ellipse_generator_forward.3} parent=11 // pred_region
          %124 = vsyncadd [#allocation4], 0
          %s126 = sshll.u32 %s0, 4
          %s127 = int_to_ptr.vmem [resolvable:$true] %s126
          %129 = dma.vmem_to_smem %s127, 16, [#allocation2], [#allocation4]
        $region16: #{ellipse_generator_forward.3} parent=11 // pred_fallthru
          _
      $region12: #{ellipse_generator_forward.3} parent=5 // pred_fallthru
        _
      %p130 = scmp.lt.s32.totalorder %s16, 2
      // Predicated region
      $region17: #{ellipse_generator_forward.3} parent=5 // pred_check
        %p131 = pneg %p130
      $region18: #{ellipse_generator_forward.3} parent=5 // pred_check_branch
        %133 = sbr.rel (%p131) target = $region20
      $region19: #{ellipse_generator_forward.3} parent=5 // pred_region
        _
      $region20: #{ellipse_generator_forward.3} parent=5 // pred_fallthru
        _
      %p134 = scmp.le.s32.totalorder 1, %s16
      %p135 = scmp.lt.s32.totalorder %s16, 3
      %p136 = pnand %p134, %p135
      %p137 = pneg %p136
      // Predicated region
      $region21: #{ellipse_generator_forward.3} parent=5 // pred_check
        _
      $region22: #{ellipse_generator_forward.3} parent=5 // pred_check_branch
        %139 = sbr.rel (%p136) target = $region24
      $region23: #{ellipse_generator_forward.3} parent=5 // pred_region
        %s140 = ssub.s32 %s16, 1
        // Predicated region
        $region25: #{ellipse_generator_forward.3} parent=23 // pred_check
          %p141 = pneg %p49
        $region26: #{ellipse_generator_forward.3} parent=23 // pred_check_branch
          %143 = sbr.rel (%p141) target = $region28
        $region27: #{ellipse_generator_forward.3} parent=23 // pred_region
          %145 = dma.done [#allocation4], 16
        $region28: #{ellipse_generator_forward.3} parent=23 // pred_fallthru
          _
        %146 = sfence
        %p147 = pneg %p49
        %p148 = pneg %p46
        %p149 = pneg %p77
        %p150 = pneg %p74
        %s151 = sand.u32 %s64, 1
        %s152 = scalar_lea.sflag [#allocation3], %s151
        %s153 = sand.u32 %s64, 1
        %s154 = smul.addr %s153, 8
        %s155 = scalar_lea.vmem [#allocation5], %s154
        %p156 = pneg %p105
        %p157 = pneg %p102
        %s158 = sand.u32 %s92, 1
        %s159 = scalar_lea.sflag [#allocation7], %s158
        %s160 = sand.u32 %s92, 1
        %s161 = smul.addr %s160, 8
        %s162 = scalar_lea.vmem [#allocation6], %s161
        %s163 = sld [smem:[#allocation2]]
        %s164 = sld [smem:[#allocation2 + $0x1]]
        %s165 = sld [smem:[#allocation2 + $0x2]]
        %s166 = sld [smem:[#allocation2 + $0x3]]
        %s167 = sld [smem:[#allocation2 + $0x4]]
        %s168 = sld [smem:[#allocation2 + $0x5]]
        %s169 = smul.u32 %s25, 8
        %s170 = smul.u32 %s26, 128
        %v171 = vlaneseq
        %v172 = vshrl.u32 %v171, 7
        %v173 = vstv %s169
        %v174 = vadd.s32 %v172, %v173
        %v175 = vcvt.s32.f32 %v174
        %v176 = vlaneseq
        %v177 = vand.u32 %v176, 127
        %v178 = vstv %s170
        %v179 = vadd.s32 %v177, %v178
        %v180 = vcvt.s32.f32 %v179
        %v181 = vstv %s163
        %v182 = vmul.f32 %v180, %v181
        %v183 = vstv %s164
        %v184 = vmul.f32 %v175, %v183
        %v185 = vadd.f32 %v182, %v184
        %v186 = vstv %s165
        %v187 = vadd.f32 %v185, %v186
        %v188 = vstv %s166
        %v189 = vmul.f32 %v180, %v188
        %v190 = vstv %s167
        %v191 = vmul.f32 %v175, %v190
        %v192 = vadd.f32 %v189, %v191
        %v193 = vstv %s168
        %v194 = vadd.f32 %v192, %v193
        %v195 = vmul.f32 %v187, %v187
        %v196 = vmul.f32 %v194, %v194
        %v197 = vadd.f32 %v195, %v196
        %v198 = vsub.f32 %v197, 1.0
        %v199 = vmul.f32 %v198, %v198
        %v200 = vsub.f32 0.0, %v199
        %v201 = vmul.f32 %v200, 50.0
        %v202 = vmul.f32 %v201, 1.442695
        %v203 = vpow.pop %v202
        %v204 = vsub.f32 1.0, %v197
        %v205 = vmul.f32 %v204, 10.0
        %v206 = vmin.f32 %v205, 80.0
        %v207 = vmul.f32 %v206, 1.442695
        %v208 = vpow.pop %v207
        %v209 = vadd.f32 %v208, 1.0
        %v210 = vrcp.pop %v209
        %v211 = vmul.f32 %v208, %v210
        %212 = vst [vmem:[%s155] sm:$0xff] %v203
        %213 = vst [vmem:[%s162] sm:$0xff] %v211
        %s214 = sand.u32 %s64, 1
        %s215 = scalar_lea.sflag [#allocation3], %s214
        %s216 = sand.u32 %s64, 1
        %s217 = smul.addr %s216, 8
        %s218 = scalar_lea.vmem [#allocation5], %s217
        %s219 = sand.u32 %s92, 1
        %s220 = scalar_lea.sflag [#allocation7], %s219
        %s221 = sand.u32 %s92, 1
        %s222 = smul.addr %s221, 8
        %s223 = scalar_lea.vmem [#allocation6], %s222
        // Predicated region
        $region29: #{ellipse_generator_forward.3} parent=23 // pred_check
          %p224 = pneg %p74
        $region30: #{ellipse_generator_forward.3} parent=23 // pred_check_branch
          %226 = sbr.rel (%p224) target = $region32
        $region31: #{ellipse_generator_forward.3} parent=23 // pred_region
          %228 = vsyncadd %s215, 0
          %s229 = sadd.s32 %s26, %s25
          %s230 = smul.addr %s229, 8
          %s231 = scalar_lea.hbm %s1, %s230
          %s233 = sshll.u32 %s218, 4
          %s234 = int_to_ptr.vmem [resolvable:$true] %s233
          %s235 = sshll.u32 %s231, 4
          %s236 = int_to_ptr.hbm [resolvable:$true] %s235
          %238 = dma.vmem_to_hbm [thread:$0]  %s234, 128, %s236, %s215
        $region32: #{ellipse_generator_forward.3} parent=23 // pred_fallthru
          _
        // Predicated region
        $region33: #{ellipse_generator_forward.3} parent=23 // pred_check
          %p239 = pneg %p102
        $region34: #{ellipse_generator_forward.3} parent=23 // pred_check_branch
          %241 = sbr.rel (%p239) target = $region36
        $region35: #{ellipse_generator_forward.3} parent=23 // pred_region
          %243 = vsyncadd %s220, 0
          %s244 = sadd.s32 %s26, %s25
          %s245 = smul.addr %s244, 8
          %s246 = scalar_lea.hbm %s2, %s245
          %s248 = sshll.u32 %s223, 4
          %s249 = int_to_ptr.vmem [resolvable:$true] %s248
          %s250 = sshll.u32 %s246, 4
          %s251 = int_to_ptr.hbm [resolvable:$true] %s250
          %253 = dma.vmem_to_hbm [thread:$0]  %s249, 128, %s251, %s220
        $region36: #{ellipse_generator_forward.3} parent=23 // pred_fallthru
          _
      $region24: #{ellipse_generator_forward.3} parent=5 // pred_fallthru
        _
      %p254 = scmp.le.s32.totalorder 2, %s16
      // Predicated region
      $region37: #{ellipse_generator_forward.3} parent=5 // pred_check
        %p255 = pneg %p254
      $region38: #{ellipse_generator_forward.3} parent=5 // pred_check_branch
        %257 = sbr.rel (%p255) target = $region40
      $region39: #{ellipse_generator_forward.3} parent=5 // pred_region
        %s258 = ssub.s32 %s16, 2
        // Predicated region
        $region41: #{ellipse_generator_forward.3} parent=39 // pred_check
          %p259 = pneg %p80
        $region42: #{ellipse_generator_forward.3} parent=39 // pred_check_branch
          %261 = sbr.rel (%p259) target = $region44
        $region43: #{ellipse_generator_forward.3} parent=39 // pred_region
          %s262 = sand.u32 %s65, 1
          %s263 = scalar_lea.sflag [#allocation3], %s262
          %s264 = sand.u32 %s65, 1
          %s265 = smul.addr %s264, 8
          %s266 = scalar_lea.vmem [#allocation5], %s265
          %268 = dma.done %s263, 128
        $region44: #{ellipse_generator_forward.3} parent=39 // pred_fallthru
          _
        // Predicated region
        $region45: #{ellipse_generator_forward.3} parent=39 // pred_check
          %p269 = pneg %p108
        $region46: #{ellipse_generator_forward.3} parent=39 // pred_check_branch
          %271 = sbr.rel (%p269) target = $region48
        $region47: #{ellipse_generator_forward.3} parent=39 // pred_region
          %s272 = sand.u32 %s93, 1
          %s273 = scalar_lea.sflag [#allocation7], %s272
          %s274 = sand.u32 %s93, 1
          %s275 = smul.addr %s274, 8
          %s276 = scalar_lea.vmem [#allocation6], %s275
          %278 = dma.done %s273, 128
        $region48: #{ellipse_generator_forward.3} parent=39 // pred_fallthru
          _
      $region40: #{ellipse_generator_forward.3} parent=5 // pred_fallthru
        _
    $region6: #{ellipse_generator_forward.3} parent=1 // loop_footer
      %s20 = sadd.s32 1, %s16
    $region7: #{ellipse_generator_forward.3} parent=1 // loop_footer_branch
      %15 = sbr.rel target = $region3
    $region8: #{ellipse_generator_forward.3} parent=1 // loop_exit
      _
    %279 = vsyncpa [#allocation3], 1
    %s280 = scalar_lea.sflag [#allocation3], 1
    %281 = vsyncpa %s280, 1
    %282 = vsyncpa [#allocation7], 1
    %s283 = scalar_lea.sflag [#allocation7], 1
    %284 = vsyncpa %s283, 1
    %285 = vsyncpa [#allocation4], 1
    %s286 = scalar_lea.sflag [#allocation4], 1
    %287 = vsyncpa %s286, 1

// kernel: ellipse_generator_forward.2
$region0: #{ellipse_generator_forward.2}
  #allocation0 [shape = 'u32[]', space=smem, size = 0x4, offset = 0x4, fixed_abs, tag = 'smem constant byte address 0x4 - core index']
  #allocation1 [shape = 'u32[72,128]{1,0:T(1,128)}', space=vmem, size = 0x9000, scoped, tag = 'internal scratch']
  %s0 = inlined_call_operand.vmem [shape: f32[8,64], index: 0, kind: input, shape index: {}]
  %s1 = inlined_call_operand.vmem [shape: f32[64,128], index: 1, kind: input, shape index: {}]
  %s2 = inlined_call_operand.vmem [shape: f32[1,128], index: 2, kind: input, shape index: {}]
  %s3 = inlined_call_operand.vmem [shape: f32[128,128], index: 3, kind: input, shape index: {}]
  %s4 = inlined_call_operand.vmem [shape: f32[1,128], index: 4, kind: input, shape index: {}]
  %s5 = inlined_call_operand.vmem [shape: f32[128,128], index: 5, kind: input, shape index: {}]
  %s6 = inlined_call_operand.vmem [shape: f32[1,128], index: 6, kind: input, shape index: {}]
  %s7 = inlined_call_operand.vmem [shape: f32[1,128], index: 7, kind: input, shape index: {}]
  %s8 = inlined_call_operand.vmem [shape: f32[8,128], index: 8, kind: output, shape index: {}]
  %s9 = sld [smem:[#allocation0]]
  $region42: #{ellipse_generator_forward.2} parent=0
    _
  %s11 = ssub.s32 1, %s9
  %s12 = scalar_select 0, %s11, %s9
  // Predicated region
  $region2: #{ellipse_generator_forward.2} parent=0 // pred_check
    _
  $region3: #{ellipse_generator_forward.2} parent=0 // pred_check_branch
    %14 = sbr.rel (0) target = $region5
  $region4: #{ellipse_generator_forward.2} parent=0 // pred_region
    _
  $region5: #{ellipse_generator_forward.2} parent=0 // pred_fallthru
    _
  // Predicated region
  $region6: #{ellipse_generator_forward.2} parent=0 // pred_check
    _
  $region7: #{ellipse_generator_forward.2} parent=0 // pred_check_branch
    %16 = sbr.rel (0) target = $region9
  $region8: #{ellipse_generator_forward.2} parent=0 // pred_region
    _
  $region9: #{ellipse_generator_forward.2} parent=0 // pred_fallthru
    _
  // Predicated region
  $region10: #{ellipse_generator_forward.2} parent=0 // pred_check
    _
  $region11: #{ellipse_generator_forward.2} parent=0 // pred_check_branch
    %18 = sbr.rel (0) target = $region13
  $region12: #{ellipse_generator_forward.2} parent=0 // pred_region
    _
  $region13: #{ellipse_generator_forward.2} parent=0 // pred_fallthru
    _
  // Predicated region
  $region14: #{ellipse_generator_forward.2} parent=0 // pred_check
    _
  $region15: #{ellipse_generator_forward.2} parent=0 // pred_check_branch
    %20 = sbr.rel (0) target = $region17
  $region16: #{ellipse_generator_forward.2} parent=0 // pred_region
    _
  $region17: #{ellipse_generator_forward.2} parent=0 // pred_fallthru
    _
  // Predicated region
  $region18: #{ellipse_generator_forward.2} parent=0 // pred_check
    _
  $region19: #{ellipse_generator_forward.2} parent=0 // pred_check_branch
    %22 = sbr.rel (0) target = $region21
  $region20: #{ellipse_generator_forward.2} parent=0 // pred_region
    _
  $region21: #{ellipse_generator_forward.2} parent=0 // pred_fallthru
    _
  // Predicated region
  $region22: #{ellipse_generator_forward.2} parent=0 // pred_check
    _
  $region23: #{ellipse_generator_forward.2} parent=0 // pred_check_branch
    %24 = sbr.rel (0) target = $region25
  $region24: #{ellipse_generator_forward.2} parent=0 // pred_region
    _
  $region25: #{ellipse_generator_forward.2} parent=0 // pred_fallthru
    _
  // Predicated region
  $region26: #{ellipse_generator_forward.2} parent=0 // pred_check
    _
  $region27: #{ellipse_generator_forward.2} parent=0 // pred_check_branch
    %26 = sbr.rel (0) target = $region29
  $region28: #{ellipse_generator_forward.2} parent=0 // pred_region
    _
  $region29: #{ellipse_generator_forward.2} parent=0 // pred_fallthru
    _
  // Predicated region
  $region30: #{ellipse_generator_forward.2} parent=0 // pred_check
    _
  $region31: #{ellipse_generator_forward.2} parent=0 // pred_check_branch
    %28 = sbr.rel (0) target = $region33
  $region32: #{ellipse_generator_forward.2} parent=0 // pred_region
    _
  $region33: #{ellipse_generator_forward.2} parent=0 // pred_fallthru
    _
  %v29 = vld [vmem:[%s0] sm:$0xff]
  %v30 = vld [vmem:[%s1] sm:$0xff]
  %v31 = vld [vmem:[%s1 + $0x8] sm:$0xff]
  %v32 = vld [vmem:[%s1 + $0x10] sm:$0xff]
  %v33 = vld [vmem:[%s1 + $0x18] sm:$0xff]
  %v34 = vld [vmem:[%s1 + $0x20] sm:$0xff]
  %v35 = vld [vmem:[%s1 + $0x28] sm:$0xff]
  %v36 = vld [vmem:[%s1 + $0x30] sm:$0xff]
  %v37 = vld [vmem:[%s1 + $0x38] sm:$0xff]
  %v38 = vld [vmem:[%s2] sm:$0x1]
  %v40 = vperm.slane %v38, 0
  %vm42 = vcmask 523264
  %v44 = vsel %vm42, %v29, 0
  %46 = vmatpush.msra.mxu0 0.0
  %47 = vmatpush.msra.mxu0 0.0
  %48 = vmatpush.msra.mxu0 0.0
  %49 = vmatpush.msra.mxu0 0.0
  %50 = vmatpush.msra.mxu0 0.0
  %51 = vmatpush.msra.mxu0 0.0
  %52 = vmatpush.msra.mxu0 0.0
  %53 = vmatpush.msra.mxu0 0.0
  %54 = vmatpush.msra.mxu0 %v37
  %55 = vmatpush.msra.mxu0 %v36
  %56 = vmatpush.msra.mxu0 %v35
  %57 = vmatpush.msra.mxu0 %v34
  %58 = vmatpush.msra.mxu0 %v33
  %59 = vmatpush.msra.mxu0 %v32
  %60 = vmatpush.msra.mxu0 %v31
  %61 = vmatpush.msra.mxu0 %v30
  %62 = vmatmul.f32.gmra.mxu0 %v44
  %v63 = vpop.f32.mrf.mxu0
  %v64 = vadd.f32 %v40, %v63
  %65 = vdwg.mxu0
  %v66 = vmul.f32 %v64, 0.1
  %v67 = vmax.f32 %v64, %v66
  %v68 = vld [vmem:[%s3] sm:$0xff]
  %v69 = vld [vmem:[%s3 + $0x8] sm:$0xff]
  %v70 = vld [vmem:[%s3 + $0x10] sm:$0xff]
  %v71 = vld [vmem:[%s3 + $0x18] sm:$0xff]
  %v72 = vld [vmem:[%s3 + $0x20] sm:$0xff]
  %v73 = vld [vmem:[%s3 + $0x28] sm:$0xff]
  %v74 = vld [vmem:[%s3 + $0x30] sm:$0xff]
  %v75 = vld [vmem:[%s3 + $0x38] sm:$0xff]
  %v76 = vld [vmem:[%s3 + $0x40] sm:$0xff]
  %v77 = vld [vmem:[%s3 + $0x48] sm:$0xff]
  %v78 = vld [vmem:[%s3 + $0x50] sm:$0xff]
  %v79 = vld [vmem:[%s3 + $0x58] sm:$0xff]
  %v80 = vld [vmem:[%s3 + $0x60] sm:$0xff]
  %v81 = vld [vmem:[%s3 + $0x68] sm:$0xff]
  %v82 = vld [vmem:[%s3 + $0x70] sm:$0xff]
  %v83 = vld [vmem:[%s3 + $0x78] sm:$0xff]
  %v84 = vld [vmem:[%s4] sm:$0x1]
  %v86 = vperm.slane %v84, 0
  %88 = vmatpush.msra.mxu0 %v83
  %89 = vmatpush.msra.mxu0 %v82
  %90 = vmatpush.msra.mxu0 %v81
  %91 = vmatpush.msra.mxu0 %v80
  %92 = vmatpush.msra.mxu0 %v79
  %93 = vmatpush.msra.mxu0 %v78
  %94 = vmatpush.msra.mxu0 %v77
  %95 = vmatpush.msra.mxu0 %v76
  %96 = vmatpush.msra.mxu0 %v75
  %97 = vmatpush.msra.mxu0 %v74
  %98 = vmatpush.msra.mxu0 %v73
  %99 = vmatpush.msra.mxu0 %v72
  %100 = vmatpush.msra.mxu0 %v71
  %101 = vmatpush.msra.mxu0 %v70
  %102 = vmatpush.msra.mxu0 %v69
  %103 = vmatpush.msra.mxu0 %v68
  %104 = vmatmul.f32.gmra.mxu0 %v67
  %v105 = vpop.f32.mrf.mxu0
  %v106 = vadd.f32 %v86, %v105
  %107 = vdwg.mxu0
  %v108 = vmul.f32 %v106, 0.1
  %v109 = vmax.f32 %v106, %v108
  %v110 = vld [vmem:[%s5] sm:$0xff]
  %v111 = vld [vmem:[%s5 + $0x8] sm:$0xff]
  %v112 = vld [vmem:[%s5 + $0x10] sm:$0xff]
  %v113 = vld [vmem:[%s5 + $0x18] sm:$0xff]
  %v114 = vld [vmem:[%s5 + $0x20] sm:$0xff]
  %v115 = vld [vmem:[%s5 + $0x28] sm:$0xff]
  %v116 = vld [vmem:[%s5 + $0x30] sm:$0xff]
  %v117 = vld [vmem:[%s5 + $0x38] sm:$0xff]
  %v118 = vld [vmem:[%s5 + $0x40] sm:$0xff]
  %v119 = vld [vmem:[%s5 + $0x48] sm:$0xff]
  %v120 = vld [vmem:[%s5 + $0x50] sm:$0xff]
  %v121 = vld [vmem:[%s5 + $0x58] sm:$0xff]
  %v122 = vld [vmem:[%s5 + $0x60] sm:$0xff]
  %v123 = vld [vmem:[%s5 + $0x68] sm:$0xff]
  %v124 = vld [vmem:[%s5 + $0x70] sm:$0xff]
  %v125 = vld [vmem:[%s5 + $0x78] sm:$0xff]
  %v126 = vld [vmem:[%s6] sm:$0x1]
  %v128 = vperm.slane %v126, 0
  %130 = vmatpush.msra.mxu0 %v125
  %131 = vmatpush.msra.mxu0 %v124
  %132 = vmatpush.msra.mxu0 %v123
  %133 = vmatpush.msra.mxu0 %v122
  %134 = vmatpush.msra.mxu0 %v121
  %135 = vmatpush.msra.mxu0 %v120
  %136 = vmatpush.msra.mxu0 %v119
  %137 = vmatpush.msra.mxu0 %v118
  %138 = vmatpush.msra.mxu0 %v117
  %139 = vmatpush.msra.mxu0 %v116
  %140 = vmatpush.msra.mxu0 %v115
  %141 = vmatpush.msra.mxu0 %v114
  %142 = vmatpush.msra.mxu0 %v113
  %143 = vmatpush.msra.mxu0 %v112
  %144 = vmatpush.msra.mxu0 %v111
  %145 = vmatpush.msra.mxu0 %v110
  %146 = vmatmul.f32.gmra.mxu0 %v109
  %v147 = vpop.f32.mrf.mxu0
  %v148 = vadd.f32 %v128, %v147
  %149 = vdwg.mxu0
  %v150 = vmul.f32 %v148, 0.5
  %v151 = vtanh.pop %v150
  %v152 = vld [vmem:[%s7] sm:$0x1]
  %v154 = vperm.slane %v152, 0
  %v156 = vadd.f32 %v151, %v154
  %157 = vst [vmem:[%s8] sm:$0xff] %v156
  // Predicated region
  $region34: #{ellipse_generator_forward.2} parent=0 // pred_check
    _
  $region35: #{ellipse_generator_forward.2} parent=0 // pred_check_branch
    %159 = sbr.rel (0) target = $region37
  $region36: #{ellipse_generator_forward.2} parent=0 // pred_region
    _
  $region37: #{ellipse_generator_forward.2} parent=0 // pred_fallthru
    _
  // Predicated region
  $region38: #{ellipse_generator_forward.2} parent=0 // pred_check
    _
  $region39: #{ellipse_generator_forward.2} parent=0 // pred_check_branch
    %161 = sbr.rel (0) target = $region41
  $region40: #{ellipse_generator_forward.2} parent=0 // pred_region
    _
  $region41: #{ellipse_generator_forward.2} parent=0 // pred_fallthru
    _

</llo_original>
